<compile_context>
chip_gen: v7x
topology: tpu7x:2x2x1
jax: 0.10.0
libtpu: 0.0.40
codegen_flags: <defaults>
</compile_context>

<pallas_src>
import functools

import jax
import jax.numpy as jnp
from jax.experimental import pallas as pl
from jax.experimental.pallas import tpu as pltpu

LANE = 128


def _cdiv(a, b):
    return (a + b - 1) // b


def _round_up(x, m):
    return _cdiv(x, m) * m


def _sublane_packing(dtype):
    """Rows per packed vreg: 8 for 4-byte, 16 for 2-byte, 32 for 1-byte dtypes."""
    return max(8, 32 // max(1, jnp.dtype(dtype).itemsize))


def _tpu_defaults():
    """(max_block_rows, num_partials) per TPU generation, with safe fallbacks."""
    kind = ""
    try:
        kind = jax.devices()[0].device_kind.lower()
    except Exception:
        pass
    if "v7" in kind:     # 2 TCs, 3.2 TB/s HBM: big blocks + 2-way partial split
        return 4096, 2
    if "v6" in kind:     # single TC, 32 MiB default scoped VMEM
        return 4096, 1
    return 2048, 1       # v5e / unknown: stay inside 16 MiB default scope


def _dice_kernel(logits_ref, target_ref, partial_ref, *,
                 rows, block_rows, inner_steps, needs_mask):
    """Reduce one (block_rows, 128) tile into the resident (1,3,8,128) accumulator."""
    p = pl.program_id(0)
    i = pl.program_id(1)

    @pl.when(i == 0)
    def _():
        partial_ref[...] = jnp.zeros_like(partial_ref)

    logits = logits_ref[...].astype(jnp.float32)
    tgt = target_ref[...].astype(jnp.float32)
    # Exact sigmoid with a single EUP transcendental (tanh) instead of exp+recip.
    pred = 0.5 * jnp.tanh(0.5 * logits) + 0.5

    if needs_mask:
        # Only ragged / overhanging blocks need this; the static flag removes it
        # entirely for exactly-tiled inputs.  jnp.where (not multiply) so any
        # garbage (possibly NaN/Inf) in Pallas' undefined block padding is killed.
        block_id = p * inner_steps + i
        row0 = block_id * block_rows
        row_ids = row0 + jax.lax.broadcasted_iota(jnp.int32, (block_rows, LANE), 0)
        valid = row_ids < rows
        pred = jnp.where(valid, pred, 0.0)
        tgt = jnp.where(valid, tgt, 0.0)

    # Vreg-granular reduction: (block_rows,128) -> (block_rows//8, 8, 128), sum
    # over the leading (vreg) axis only — pure VALU adds, no XLU collapse.
    m = block_rows // 8
    tp = (tgt * pred).reshape(m, 8, LANE)
    pr = pred.reshape(m, 8, LANE)
    tg = tgt.reshape(m, 8, LANE)

    partial_ref[0, 0] = partial_ref[0, 0] + jnp.sum(tp, axis=0)
    partial_ref[0, 1] = partial_ref[0, 1] + jnp.sum(pr, axis=0)
    partial_ref[0, 2] = partial_ref[0, 2] + jnp.sum(tg, axis=0)


def dice_loss_with_logits(output, target, smooth=1e-6):
    """Pallas equivalent of DiceLossWithLogits.forward(output, target)."""
    out_flat = output.reshape(-1)   # bitcast reshape, dtype preserved through HBM
    tgt_flat = target.reshape(-1)
    n = out_flat.shape[0]

    rows = n // LANE                # lane-aligned bulk -> kernel
    tail = n - rows * LANE          # < 128 leftover elements -> tiny XLA sum

    sums = jnp.zeros((3,), jnp.float32)   # [intersection, pred_sum, target_sum]

    if rows > 0:
        max_block_rows, num_partials = _tpu_defaults()
        row_align = max(_sublane_packing(output.dtype),
                        _sublane_packing(target.dtype))

        rows_per_partial = _round_up(_cdiv(rows, num_partials), row_align)
        block_rows = min(_round_up(max_block_rows, row_align), rows_per_partial)
        num_blocks = _cdiv(rows, block_rows)
        num_partials = max(1, min(num_partials, num_blocks))
        inner_steps = _cdiv(num_blocks, num_partials)
        needs_mask = (num_blocks * block_rows != rows) or \
                     (num_partials * inner_steps != num_blocks)

        if tail:
            # TODO(synk): for non-128-multiple sizes this bulk slice may cost one
            # extra XLA copy; the common lane-aligned path below is copy-free.
            bulk_out = out_flat[: rows * LANE]
            bulk_tgt = tgt_flat[: rows * LANE]
        else:
            bulk_out = out_flat
            bulk_tgt = tgt_flat
        out2d = bulk_out.reshape(rows, LANE)
        tgt2d = bulk_tgt.reshape(rows, LANE)

        last_block = num_blocks - 1

        def in_index_map(p, i):
            # Clamp so a (rare) overhanging grid step re-reads the last real
            # block; its contribution is zeroed by the in-kernel row mask.
            return (jnp.minimum(p * inner_steps + i, last_block), 0)

        in_blk = pl.BlockSpec((block_rows, LANE), in_index_map)
        out_blk = pl.BlockSpec((1, 3, 8, LANE), lambda p, i: (p, 0, 0, 0))

        kernel = functools.partial(
            _dice_kernel, rows=rows, block_rows=block_rows,
            inner_steps=inner_steps, needs_mask=needs_mask)

        bytes_in = rows * LANE * (jnp.dtype(output.dtype).itemsize +
                                  jnp.dtype(target.dtype).itemsize)
        cost = pl.CostEstimate(
            flops=9 * rows * LANE,
            transcendentals=rows * LANE,
            bytes_accessed=bytes_in + num_partials * 3 * 8 * LANE * 4)

        partials = pl.pallas_call(
            kernel,
            out_shape=jax.ShapeDtypeStruct((num_partials, 3, 8, LANE),
                                           jnp.float32),
            grid=(num_partials, inner_steps),
            in_specs=[in_blk, in_blk],
            out_specs=out_blk,
            compiler_params=pltpu.CompilerParams(
                dimension_semantics=("parallel", "arbitrary")),
            cost_estimate=cost,
        )(out2d, tgt2d)

        # Tiny final reduction (partials is at most (2, 3, 8, 128)).
        sums = sums + jnp.sum(partials, axis=(0, 2, 3))

    if tail:
        t_logits = out_flat[rows * LANE:].astype(jnp.float32)
        t_tgt = tgt_flat[rows * LANE:].astype(jnp.float32)
        t_pred = jax.nn.sigmoid(t_logits)
        sums = sums + jnp.stack([jnp.sum(t_tgt * t_pred),
                                 jnp.sum(t_pred),
                                 jnp.sum(t_tgt)])

    intersection, pred_sum, tgt_sum = sums[0], sums[1], sums[2]
    dice = (2.0 * intersection + smooth) / (pred_sum + tgt_sum + smooth)
    return 1.0 - dice


def _reference(output, target, smooth=1e-6):
    pred = jax.nn.sigmoid(output.astype(jnp.float32))
    tgt = target.astype(jnp.float32)
    intersection = jnp.sum(tgt * pred)
    union = jnp.sum(pred) + jnp.sum(tgt)
    return 1.0 - (2.0 * intersection + smooth) / (union + smooth)


if __name__ == "__main__":
    key = jax.random.PRNGKey(0)
    k1, k2 = jax.random.split(key)

    # NCHW segmentation head: batch=2, channels=4, 16x16 spatial.
    x_shape = (2, 4, 16, 16)
    logits = jax.random.normal(k1, x_shape, dtype=jnp.float32)
    target = (jax.random.uniform(k2, x_shape) > 0.5).astype(jnp.float32)

    loss = dice_loss_with_logits(logits, target)
    loss = jax.block_until_ready(loss)

    ref = _reference(logits, target)
    assert jnp.allclose(loss, ref, atol=1e-5, rtol=1e-5), (loss, ref)

    print("KERNEL_OK")
</pallas_src>

<mosaic_0001>
module attributes {stable_mosaic.version = 11 : i64} {
  func.func @_dice_kernel(%arg0: i32, %arg1: i32, %arg2: memref<16x128xf32, #tpu.memory_space<vmem>>, %arg3: memref<16x128xf32, #tpu.memory_space<vmem>>, %arg4: memref<1x3x8x128xf32, #tpu.memory_space<vmem>>) attributes {dimension_semantics = [#tpu.dimension_semantics<parallel>, #tpu.dimension_semantics<arbitrary>], iteration_bounds = array<i64: 1, 1>, scalar_prefetch = 0 : i64, scratch_operands = 0 : i64, tpu.core_type = #tpu.core_type<tc>, window_params = [{transform_indices = @transform_0, window_bounds = array<i64: 16, 128>}, {transform_indices = @transform_1, window_bounds = array<i64: 16, 128>}, {transform_indices = @transform_2, window_bounds = array<i64: 1, 3, 8, 128>}]} {
    %c0_i32 = arith.constant 0 : i32
    %0 = arith.cmpi eq, %arg1, %c0_i32 : i32
    %1 = arith.extui %0 : i1 to i32
    %c0_i32_0 = arith.constant 0 : i32
    %2 = arith.cmpi ne, %1, %c0_i32_0 : i32
    scf.if %2 {
      %cst_31 = arith.constant 0.000000e+00 : f32
      %37 = vector.broadcast %cst_31 : f32 to vector<1x3x8x128xf32>
      %c0_32 = arith.constant 0 : index
      %c0_33 = arith.constant 0 : index
      %c0_34 = arith.constant 0 : index
      %c0_35 = arith.constant 0 : index
      %38 = vector.load %arg4[%c0_32, %c0_33, %c0_34, %c0_35] : memref<1x3x8x128xf32, #tpu.memory_space<vmem>>, vector<1x3x8x128xf32>
      tpu.vector_store %arg4[%c0_32, %c0_33, %c0_34, %c0_35], %37 {strides = array<i32>} : memref<1x3x8x128xf32, #tpu.memory_space<vmem>>, vector<1x3x8x128xf32>,
    } else {
    }
    %c0 = arith.constant 0 : index
    %c0_1 = arith.constant 0 : index
    %3 = vector.load %arg2[%c0, %c0_1] : memref<16x128xf32, #tpu.memory_space<vmem>>, vector<16x128xf32>
    %c0_2 = arith.constant 0 : index
    %c0_3 = arith.constant 0 : index
    %4 = vector.load %arg3[%c0_2, %c0_3] : memref<16x128xf32, #tpu.memory_space<vmem>>, vector<16x128xf32>
    %cst = arith.constant 5.000000e-01 : f32
    %5 = vector.broadcast %cst : f32 to vector<16x128xf32>
    %6 = arith.mulf %5, %3 : vector<16x128xf32>
    %7 = math.tanh %6 : vector<16x128xf32>
    %cst_4 = arith.constant 5.000000e-01 : f32
    %8 = vector.broadcast %cst_4 : f32 to vector<16x128xf32>
    %9 = arith.mulf %8, %7 : vector<16x128xf32>
    %cst_5 = arith.constant 5.000000e-01 : f32
    %10 = vector.broadcast %cst_5 : f32 to vector<16x128xf32>
    %11 = arith.addf %9, %10 : vector<16x128xf32>
    %12 = arith.mulf %4, %11 : vector<16x128xf32>
    %13 = vector.shape_cast %12 : vector<16x128xf32> to vector<2x8x128xf32>
    %14 = vector.shape_cast %11 : vector<16x128xf32> to vector<2x8x128xf32>
    %15 = vector.shape_cast %4 : vector<16x128xf32> to vector<2x8x128xf32>
    %c0_6 = arith.constant 0 : index
    %c0_7 = arith.constant 0 : index
    %c0_8 = arith.constant 0 : index
    %c0_9 = arith.constant 0 : index
    %16 = vector.load %arg4[%c0_6, %c0_7, %c0_8, %c0_9] : memref<1x3x8x128xf32, #tpu.memory_space<vmem>>, vector<1x1x8x128xf32>
    %17 = vector.shape_cast %16 : vector<1x1x8x128xf32> to vector<8x128xf32>
    %cst_10 = arith.constant dense<0.000000e+00> : vector<8x128xf32>
    %18 = vector.multi_reduction <add>, %13, %cst_10 [0] : vector<2x8x128xf32> to vector<8x128xf32>
    %19 = arith.addf %17, %18 : vector<8x128xf32>
    %c0_11 = arith.constant 0 : index
    %c0_12 = arith.constant 0 : index
    %c0_13 = arith.constant 0 : index
    %c0_14 = arith.constant 0 : index
    %20 = vector.load %arg4[%c0_11, %c0_12, %c0_13, %c0_14] : memref<1x3x8x128xf32, #tpu.memory_space<vmem>>, vector<1x1x8x128xf32>
    %21 = vector.shape_cast %20 : vector<1x1x8x128xf32> to vector<8x128xf32>
    %22 = vector.shape_cast %19 : vector<8x128xf32> to vector<1x1x8x128xf32>
    tpu.vector_store %arg4[%c0_11, %c0_12, %c0_13, %c0_14], %22 {strides = array<i32>} : memref<1x3x8x128xf32, #tpu.memory_space<vmem>>, vector<1x1x8x128xf32>,
    %c0_15 = arith.constant 0 : index
    %c1 = arith.constant 1 : index
    %c0_16 = arith.constant 0 : index
    %c0_17 = arith.constant 0 : index
    %23 = vector.load %arg4[%c0_15, %c1, %c0_16, %c0_17] : memref<1x3x8x128xf32, #tpu.memory_space<vmem>>, vector<1x1x8x128xf32>
    %24 = vector.shape_cast %23 : vector<1x1x8x128xf32> to vector<8x128xf32>
    %cst_18 = arith.constant dense<0.000000e+00> : vector<8x128xf32>
    %25 = vector.multi_reduction <add>, %14, %cst_18 [0] : vector<2x8x128xf32> to vector<8x128xf32>
    %26 = arith.addf %24, %25 : vector<8x128xf32>
    %c0_19 = arith.constant 0 : index
    %c1_20 = arith.constant 1 : index
    %c0_21 = arith.constant 0 : index
    %c0_22 = arith.constant 0 : index
    %27 = vector.load %arg4[%c0_19, %c1_20, %c0_21, %c0_22] : memref<1x3x8x128xf32, #tpu.memory_space<vmem>>, vector<1x1x8x128xf32>
    %28 = vector.shape_cast %27 : vector<1x1x8x128xf32> to vector<8x128xf32>
    %29 = vector.shape_cast %26 : vector<8x128xf32> to vector<1x1x8x128xf32>
    tpu.vector_store %arg4[%c0_19, %c1_20, %c0_21, %c0_22], %29 {strides = array<i32>} : memref<1x3x8x128xf32, #tpu.memory_space<vmem>>, vector<1x1x8x128xf32>,
    %c0_23 = arith.constant 0 : index
    %c2 = arith.constant 2 : index
    %c0_24 = arith.constant 0 : index
    %c0_25 = arith.constant 0 : index
    %30 = vector.load %arg4[%c0_23, %c2, %c0_24, %c0_25] : memref<1x3x8x128xf32, #tpu.memory_space<vmem>>, vector<1x1x8x128xf32>
    %31 = vector.shape_cast %30 : vector<1x1x8x128xf32> to vector<8x128xf32>
    %cst_26 = arith.constant dense<0.000000e+00> : vector<8x128xf32>
    %32 = vector.multi_reduction <add>, %15, %cst_26 [0] : vector<2x8x128xf32> to vector<8x128xf32>
    %33 = arith.addf %31, %32 : vector<8x128xf32>
    %c0_27 = arith.constant 0 : index
    %c2_28 = arith.constant 2 : index
    %c0_29 = arith.constant 0 : index
    %c0_30 = arith.constant 0 : index
    %34 = vector.load %arg4[%c0_27, %c2_28, %c0_29, %c0_30] : memref<1x3x8x128xf32, #tpu.memory_space<vmem>>, vector<1x1x8x128xf32>
    %35 = vector.shape_cast %34 : vector<1x1x8x128xf32> to vector<8x128xf32>
    %36 = vector.shape_cast %33 : vector<8x128xf32> to vector<1x1x8x128xf32>
    tpu.vector_store %arg4[%c0_27, %c2_28, %c0_29, %c0_30], %36 {strides = array<i32>} : memref<1x3x8x128xf32, #tpu.memory_space<vmem>>, vector<1x1x8x128xf32>,
    return
  }
  func.func @transform_0(%arg0: i32, %arg1: i32) -> (i32, i32) {
    %c1_i32 = arith.constant 1 : i32
    %0 = arith.muli %arg0, %c1_i32 : i32
    %1 = arith.addi %0, %arg1 : i32
    %c0_i32 = arith.constant 0 : i32
    %2 = arith.minsi %1, %c0_i32 : i32
    %c0_i32_0 = arith.constant 0 : i32
    %c0_i32_1 = arith.constant 0 : i32
    return %2, %c0_i32_0 : i32, i32
  }
  func.func @transform_1(%arg0: i32, %arg1: i32) -> (i32, i32) {
    %c1_i32 = arith.constant 1 : i32
    %0 = arith.muli %arg0, %c1_i32 : i32
    %1 = arith.addi %0, %arg1 : i32
    %c0_i32 = arith.constant 0 : i32
    %2 = arith.minsi %1, %c0_i32 : i32
    %c0_i32_0 = arith.constant 0 : i32
    %c0_i32_1 = arith.constant 0 : i32
    return %2, %c0_i32_0 : i32, i32
  }
  func.func @transform_2(%arg0: i32, %arg1: i32) -> (i32, i32, i32, i32) {
    %c0_i32 = arith.constant 0 : i32
    %c0_i32_0 = arith.constant 0 : i32
    %c0_i32_1 = arith.constant 0 : i32
    %c0_i32_2 = arith.constant 0 : i32
    return %arg0, %c0_i32, %c0_i32_0, %c0_i32_1 : i32, i32, i32, i32
  }
}

</mosaic_0001>

<llo_original>
// kernel: tpu_custom_call.1
$region0: #{tpu_custom_call.1}
  #allocation0 [shape = 'u32[]', space=smem, size = 0x4, offset = 0x4, fixed_abs, tag = 'smem constant byte address 0x4 - core index']
  #allocation1 [shape = 'u32[144,128]{1,0:T(1,128)}', space=vmem, size = 0x12000, scoped, tag = 'internal scratch']
  %s0 = inlined_call_operand.hbm [shape: f32[16,128], index: 0, kind: input, shape index: {}]
  %s1 = inlined_call_operand.hbm [shape: f32[16,128], index: 1, kind: input, shape index: {}]
  %s2 = inlined_call_operand.hbm [shape: f32[1,3,8,128], index: 2, kind: output, shape index: {}]
  %s3 = sld [smem:[#allocation0]]
  $region30: #{tpu_custom_call.1} parent=0
    _
  %s5 = ssub.s32 1, %s3
  %s6 = scalar_select 0, %s5, %s3
  $region1: #{tpu_custom_call.1} parent=0
    #allocation2 [shape = 'u8[8192]{0}', space=vmem, size = 0x2000, scoped, tag = 'input window, operand 0, single buffered']
    #allocation3 [shape = 's32[1]{0}', space=sflag, size = 0x4, scoped, tag = 'scoped memory for tpu_custom_call.1']
    #allocation4 [shape = 's32[1]{0}', space=sflag, size = 0x4, scoped, tag = 'scoped memory for tpu_custom_call.1']
    #allocation5 [shape = 'u8[8192]{0}', space=vmem, size = 0x2000, scoped, tag = 'input window, operand 1, single buffered']
    #allocation6 [shape = 's32[1]{0}', space=sflag, size = 0x4, scoped, tag = 'scoped memory for tpu_custom_call.1']
    #allocation7 [shape = 'u8[12288]{0}', space=vmem, size = 0x3000, scoped, tag = 'output window, operand 0, single buffered']
    %7 = vsyncpa [#allocation3], 0
    %8 = vsyncpa [#allocation6], 0
    %9 = vsyncpa [#allocation4], 0
    // Predicated region
    $region2: #{tpu_custom_call.1} parent=1 // pred_check
      _
    $region3: #{tpu_custom_call.1} parent=1 // pred_check_branch
      %11 = sbr.rel (0) target = $region5
    $region4: #{tpu_custom_call.1} parent=1 // pred_region
      %s12 = sadd.s32 0, 0
      %p13 = scmp.lt.s32.totalorder %s12, 0
      %s14 = scalar_select %p13, %s12, 0
      %s15 = smul.u32 2, %s14
      %s17 = ssub.s32 256, 256
      %18 = vsyncadd [#allocation3], %s17
      %s19 = smul.addr %s15, 128
      %s20 = scalar_lea.hbm %s0, %s19
      %s21 = sshll.u32 [#allocation2], 4
      %s22 = int_to_ptr.vmem [resolvable:$true] %s21
      %27 = dma.hbm_to_vmem [thread:$0]  %s20, 256, %s22, [#allocation3], 128, 128, 8
    $region5: #{tpu_custom_call.1} parent=1 // pred_fallthru
      _
    // Predicated region
    $region6: #{tpu_custom_call.1} parent=1 // pred_check
      _
    $region7: #{tpu_custom_call.1} parent=1 // pred_check_branch
      %29 = sbr.rel (0) target = $region9
    $region8: #{tpu_custom_call.1} parent=1 // pred_region
      %s30 = sadd.s32 0, 0
      %p31 = scmp.lt.s32.totalorder %s30, 0
      %s32 = scalar_select %p31, %s30, 0
      %s33 = smul.u32 2, %s32
      %s35 = ssub.s32 256, 256
      %36 = vsyncadd [#allocation6], %s35
      %s37 = smul.addr %s33, 128
      %s38 = scalar_lea.hbm %s1, %s37
      %s39 = sshll.u32 [#allocation5], 4
      %s40 = int_to_ptr.vmem [resolvable:$true] %s39
      %45 = dma.hbm_to_vmem [thread:$0]  %s38, 256, %s40, [#allocation6], 128, 128, 8
    $region9: #{tpu_custom_call.1} parent=1 // pred_fallthru
      _
    // Predicated region
    $region10: #{tpu_custom_call.1} parent=1 // pred_check
      _
    $region11: #{tpu_custom_call.1} parent=1 // pred_check_branch
      %47 = sbr.rel (0) target = $region13
    $region12: #{tpu_custom_call.1} parent=1 // pred_region
      %48 = dma.done [#allocation3], 256
    $region13: #{tpu_custom_call.1} parent=1 // pred_fallthru
      _
    // Predicated region
    $region14: #{tpu_custom_call.1} parent=1 // pred_check
      _
    $region15: #{tpu_custom_call.1} parent=1 // pred_check_branch
      %50 = sbr.rel (0) target = $region17
    $region16: #{tpu_custom_call.1} parent=1 // pred_region
      %51 = dma.done [#allocation6], 256
    $region17: #{tpu_custom_call.1} parent=1 // pred_fallthru
      _
    %s52 = sadd.s32 0, 0
    %p53 = scmp.lt.s32.totalorder %s52, 0
    %s54 = scalar_select %p53, %s52, 0
    %s55 = smul.u32 2, %s54
    %s56 = sadd.s32 0, 0
    %p57 = scmp.lt.s32.totalorder %s56, 0
    %s58 = scalar_select %p57, %s56, 0
    %s59 = smul.u32 2, %s58
    %p60 = scmp.eq.s32.totalorder 0, 0
    // Predicated region
    $region18: #{tpu_custom_call.1} parent=1 // pred_check
      %p61 = pneg %p60
    $region19: #{tpu_custom_call.1} parent=1 // pred_check_branch
      %63 = sbr.rel (%p61) target = $region21
    $region20: #{tpu_custom_call.1} parent=1 // pred_region
      %64 = vst [vmem:[#allocation7] sm:$0xff] 0.0
      %65 = vst [vmem:[#allocation7 + $0x8] sm:$0xff] 0.0
      %66 = vst [vmem:[#allocation7 + $0x10] sm:$0xff] 0.0
    $region21: #{tpu_custom_call.1} parent=1 // pred_fallthru
      _
    %v67 = vld [vmem:[#allocation2] sm:$0xff]
    %v68 = vld [vmem:[#allocation2 + $0x8] sm:$0xff]
    %v69 = vld [vmem:[#allocation5] sm:$0xff]
    %v70 = vld [vmem:[#allocation5 + $0x8] sm:$0xff]
    %v71 = vmul.f32 %v67, 0.5
    %v72 = vmul.f32 %v68, 0.5
    %v73 = vtanh.pop %v71
    %v74 = vtanh.pop %v72
    %v75 = vmul.f32 %v73, 0.5
    %v76 = vmul.f32 %v74, 0.5
    %v77 = vadd.f32 %v75, 0.5
    %v78 = vadd.f32 %v76, 0.5
    %v79 = vmul.f32 %v69, %v77
    %v80 = vmul.f32 %v70, %v78
    %v81 = vld [vmem:[#allocation7] sm:$0xff]
    %v82 = vadd.f32 %v79, %v80
    %v83 = vadd.f32 %v81, %v82
    %84 = vst [vmem:[#allocation7] sm:$0xff] %v83
    %s85 = scalar_lea.vmem [#allocation7], 8
    %v86 = vld [vmem:[%s85] sm:$0xff]
    %v87 = vadd.f32 %v77, %v78
    %v88 = vadd.f32 %v86, %v87
    %89 = vst [vmem:[%s85] sm:$0xff] %v88
    %s90 = scalar_lea.vmem [#allocation7], 16
    %v91 = vld [vmem:[%s90] sm:$0xff]
    %v92 = vadd.f32 %v69, %v70
    %v93 = vadd.f32 %v91, %v92
    %94 = vst [vmem:[%s90] sm:$0xff] %v93
    // Predicated region
    $region22: #{tpu_custom_call.1} parent=1 // pred_check
      _
    $region23: #{tpu_custom_call.1} parent=1 // pred_check_branch
      %96 = sbr.rel (0) target = $region25
    $region24: #{tpu_custom_call.1} parent=1 // pred_region
      %s98 = ssub.s32 384, 384
      %99 = vsyncadd [#allocation4], %s98
      %s100 = sshll.u32 [#allocation7], 4
      %s101 = int_to_ptr.vmem [resolvable:$true] %s100
      %106 = dma.vmem_to_hbm [thread:$0]  %s101, 384, %s2, [#allocation4], 128, 128, 8
    $region25: #{tpu_custom_call.1} parent=1 // pred_fallthru
      _
    // Predicated region
    $region26: #{tpu_custom_call.1} parent=1 // pred_check
      _
    $region27: #{tpu_custom_call.1} parent=1 // pred_check_branch
      %108 = sbr.rel (0) target = $region29
    $region28: #{tpu_custom_call.1} parent=1 // pred_region
      %109 = dma.done [#allocation4], 384
    $region29: #{tpu_custom_call.1} parent=1 // pred_fallthru
      _
    %110 = vsyncpa [#allocation3], 1
    %111 = vsyncpa [#allocation6], 1
    %112 = vsyncpa [#allocation4], 1

</llo_original>
